<compile_context>
chip_gen: v7x
topology: tpu7x:2x2x1
jax: 0.10.0
libtpu: 0.0.40
codegen_flags: <defaults>
</compile_context>

<pallas_src>
import jax
import jax.numpy as jnp
from jax.experimental import pallas as pl
from jax.experimental.pallas import tpu as pltpu


# ---------------------------------------------------------------------------
# Fused kernel: embedding gather + pair-sum + MLP (l1,relu,l2,relu) + unembed.
# ---------------------------------------------------------------------------
def _fused_forward_kernel(ids0_ref, ids1_ref,           # scalar prefetch (SMEM)
                          embed_hbm,                     # [V, D] raw HBM ref
                          w1t_ref, b1_ref, w2t_ref, b2_ref, ut_ref,
                          o_ref,                         # [TB, TV] logits tile
                          e0_buf, e1_buf, h_buf, sem):
    i = pl.program_id(0)          # row-tile index   ("parallel")
    j = pl.program_id(1)          # vocab-tile index ("arbitrary", innermost)
    block_rows = e0_buf.shape[0]

    # NOTE: h_buf carries the hidden state across the vocab axis; the vocab
    # axis must therefore stay the innermost, "arbitrary" grid dimension.
    @pl.when(j == 0)
    def _():
        base = i * block_rows

        # Gather the 2*block_rows embedding rows this row tile needs.  Token
        # ids live in SMEM (scalar prefetch) and drive dynamic HBM->VMEM DMAs.
        @pl.loop(0, block_rows)
        def _(r):
            t0 = ids0_ref[base + r]
            t1 = ids1_ref[base + r]
            pltpu.make_async_copy(embed_hbm.at[pl.ds(t0, 1)],
                                  e0_buf.at[pl.ds(r, 1)], sem).start()
            pltpu.make_async_copy(embed_hbm.at[pl.ds(t1, 1)],
                                  e1_buf.at[pl.ds(r, 1)], sem).start()

        # Every row copy moves the same number of bytes, so wait 2*block_rows
        # times on the shared DMA semaphore with a same-shaped descriptor.
        @pl.loop(0, 2 * block_rows)
        def _(r):
            pltpu.make_async_copy(embed_hbm.at[pl.ds(0, 1)],
                                  e0_buf.at[pl.ds(0, 1)], sem).wait()

        # Hidden MLP runs once per row tile and is reused for all vocab tiles.
        e = (e0_buf[...] + e1_buf[...]).astype(w1t_ref.dtype)
        h = jnp.dot(e, w1t_ref[...], preferred_element_type=jnp.float32)
        # l1(e0) + l1(e1) == (e0 + e1) @ W1^T + 2*b1   (linearity; relu after)
        h = h + 2.0 * b1_ref[...].astype(jnp.float32)
        h = jnp.maximum(h, 0.0)
        h = jnp.dot(h.astype(w2t_ref.dtype), w2t_ref[...],
                    preferred_element_type=jnp.float32)
        h = h + b2_ref[...].astype(jnp.float32)
        h_buf[...] = jnp.maximum(h, 0.0)

    logits = jnp.dot(h_buf[...].astype(ut_ref.dtype), ut_ref[...],
                     preferred_element_type=jnp.float32)
    o_ref[...] = logits.astype(o_ref.dtype)


# ---------------------------------------------------------------------------
# Wrapper: parameter relayout (one-time) + tile selection + pallas_call.
# ---------------------------------------------------------------------------
def prepare_params(embed_w, unembed_w, w1, b1, w2, b2, *, weight_dtype=None):
    """One-time parameter relayout, hoisted off the per-call hot path.

    weight_dtype: optionally cast the streamed matmul weights (w1, w2,
    unembed) to e.g. jnp.bfloat16 — halves the dominant u_t HBM stream and
    doubles MXU rate; accumulation stays f32 in-kernel.
    """
    dt = weight_dtype if weight_dtype is not None else jnp.asarray(w1).dtype
    D = w1.shape[0]
    return dict(
        embed_w=jnp.asarray(embed_w),                 # gathered in-kernel
        w1_t=jnp.asarray(w1).T.astype(dt),            # [D, D] ([K, N] layout)
        w2_t=jnp.asarray(w2).T.astype(dt),            # [D, D]
        u_t=jnp.asarray(unembed_w).T.astype(dt),      # [D, V] lane-dense cols
        b1=jnp.asarray(b1).reshape(1, D),
        b2=jnp.asarray(b2).reshape(1, D),
    )


def _vmem_bytes(block_rows, block_vocab, D, w_bytes, e_bytes, o_bytes):
    # Double-buffered pipelined operands + persistent scratch.
    weights = 2 * (2 * D * D + 2 * D) * w_bytes        # w1t, w2t, b1, b2
    ut      = 2 * D * block_vocab * w_bytes            # unembed slab tile
    out     = 2 * block_rows * block_vocab * o_bytes   # logits tile
    scratch = 2 * block_rows * D * e_bytes + block_rows * D * 4
    return weights + ut + out + scratch


def _select_tiles(B, V, D, w_bytes, e_bytes, o_bytes):
    """Pick (block_rows, block_vocab):
      * block_vocab: multiple of 256 when possible (v6e/v7x MXU width), as
        large as the budget allows -> fewer grid steps, unmasked vst.
      * block_rows: as large as possible (each row tile re-streams u_t), but
        keep >= 2 row tiles when B >= 16 so the 'parallel' row axis can feed
        both v7x TensorCores.
      * footprint bounded to ~40 MiB: fits v7x's 64 MiB physical VMEM and
        v5e/v6e once vmem_limit_bytes is raised above their defaults.
    """
    budget = 40 * 2**20
    row_cap = B if B < 16 else B // 2
    row_cap = min(row_cap, 1024)

    def row_cands():
        c = row_cap - (row_cap % 8)
        while c >= 8:
            if B % c == 0:
                yield c
            c -= 8

    def vocab_cands():
        for step in (256, 128):
            c = min(V, 2048)
            c -= c % step
            while c >= step:
                if V % c == 0:
                    yield c
                c -= step

    for tv in vocab_cands():
        for tr in row_cands():
            if _vmem_bytes(tr, tv, D, w_bytes, e_bytes, o_bytes) <= budget:
                return tr, tv
    return 8, 128


def my_model_c_forward(token_ids, params, *, block_rows=None, block_vocab=None,
                       logits_dtype=None):
    """Forward pass of MyModelC: token_ids [B, 2] (int) -> logits [B, V]."""
    B, T = token_ids.shape
    assert T == 2, "MyModelC.backdoor requires exactly two token positions"
    embed_w = params["embed_w"]
    V, D = embed_w.shape
    w1_t, w2_t, u_t = params["w1_t"], params["w2_t"], params["u_t"]
    b1, b2 = params["b1"], params["b2"]
    assert w1_t.shape == (D, D) and w2_t.shape == (D, D)
    assert u_t.shape == (D, V) and b1.shape == (1, D) and b2.shape == (1, D)
    # Toy wrapper assumes sublane/lane-aligned shapes (no padding path).
    assert B % 8 == 0 and D % 128 == 0 and V % 128 == 0

    out_dtype = logits_dtype if logits_dtype is not None else embed_w.dtype
    w_bytes = jnp.dtype(w1_t.dtype).itemsize
    e_bytes = jnp.dtype(embed_w.dtype).itemsize
    o_bytes = jnp.dtype(out_dtype).itemsize

    tr, tv = _select_tiles(B, V, D, w_bytes, e_bytes, o_bytes)
    block_rows = block_rows if block_rows is not None else tr
    block_vocab = block_vocab if block_vocab is not None else tv
    assert block_rows % 8 == 0 and B % block_rows == 0
    assert block_vocab % 128 == 0 and V % block_vocab == 0

    est = _vmem_bytes(block_rows, block_vocab, D, w_bytes, e_bytes, o_bytes)
    # Raise the scoped-VMEM cap above v5e's 16 MiB / 32 MiB defaults, but stay
    # below v7x's 64 MiB physical VMEM.
    vmem_limit = int(min(max(2 * est, 32 * 2**20), 60 * 2**20))

    ids = token_ids.astype(jnp.int32)
    ids0, ids1 = ids[:, 0], ids[:, 1]

    grid = (B // block_rows, V // block_vocab)

    return pl.pallas_call(
        _fused_forward_kernel,
        out_shape=jax.ShapeDtypeStruct((B, V), out_dtype),
        grid_spec=pltpu.PrefetchScalarGridSpec(
            num_scalar_prefetch=2,
            grid=grid,
            in_specs=[
                # Embedding table: raw HBM ref, gathered manually in-kernel.
                pl.BlockSpec(memory_space=pl.ANY),
                # Grid-invariant weight slabs.  (pipeline_mode=pl.Buffered(1)
                # could reclaim their second buffer; negligible at D=128.)
                pl.BlockSpec((D, D), lambda i, j, *_: (0, 0)),
                pl.BlockSpec((1, D), lambda i, j, *_: (0, 0)),
                pl.BlockSpec((D, D), lambda i, j, *_: (0, 0)),
                pl.BlockSpec((1, D), lambda i, j, *_: (0, 0)),
                # Unembed slab tile: lane-dense logits columns.
                pl.BlockSpec((D, block_vocab), lambda i, j, *_: (0, j)),
            ],
            out_specs=pl.BlockSpec((block_rows, block_vocab),
                                   lambda i, j, *_: (i, j)),
            scratch_shapes=[
                pltpu.VMEM((block_rows, D), embed_w.dtype),   # e0 rows
                pltpu.VMEM((block_rows, D), embed_w.dtype),   # e1 rows
                pltpu.VMEM((block_rows, D), jnp.float32),     # hidden state
                pltpu.SemaphoreType.DMA(()),                  # gather DMAs
            ],
        ),
        compiler_params=pltpu.CompilerParams(
            # Row tiles are independent (megacore-shardable on v7x); the vocab
            # axis carries the hidden-state scratch, so it must stay
            # "arbitrary" and innermost.
            dimension_semantics=("parallel", "arbitrary"),
            vmem_limit_bytes=vmem_limit,
        ),
    )(ids0, ids1, embed_w, w1_t, b1, w2_t, b2, u_t)


if __name__ == "__main__":
    # Small, lane/sublane-aligned toy shapes consistent with the module:
    # tokens [batch, 2], d_model = 128, n_vocab = 256.
    batch, n_vocab, d_model = 8, 256, 128
    tied_embeddings = False

    key = jax.random.PRNGKey(0)
    k_e, k_u, k_w1, k_b1, k_w2, k_b2, k_ids = jax.random.split(key, 7)

    # Parameter init mirroring MyModelC.__init__ scaling.
    embed_w = (jax.random.normal(k_e, (n_vocab, d_model), jnp.float32)
               / jnp.sqrt(jnp.float32(d_model // 2)))
    if tied_embeddings:
        unembed_w = embed_w
    else:
        unembed_w = (jax.random.normal(k_u, (n_vocab, d_model), jnp.float32)
                     / jnp.sqrt(jnp.float32(d_model)))
    w1 = (jax.random.normal(k_w1, (d_model, d_model), jnp.float32)
          / jnp.sqrt(jnp.float32(d_model)))
    b1 = jax.random.normal(k_b1, (d_model,), jnp.float32) * 0.1
    w2 = (jax.random.normal(k_w2, (d_model, d_model), jnp.float32)
          / jnp.sqrt(jnp.float32(d_model)))
    b2 = jax.random.normal(k_b2, (d_model,), jnp.float32) * 0.1

    token_ids = jax.random.randint(k_ids, (batch, 2), 0, n_vocab,
                                   dtype=jnp.int32)

    # One-time param relayout (production would also pass
    # weight_dtype=jnp.bfloat16 to halve the streamed unembed slab).
    params = prepare_params(embed_w, unembed_w, w1, b1, w2, b2)

    logits = my_model_c_forward(token_ids, params)
    jax.block_until_ready(logits)

    # Pure-JAX reference of the PyTorch forward.
    e = embed_w[token_ids]                              # [B, 2, D]
    h = (e[:, 0] @ w1.T + b1) + (e[:, 1] @ w1.T + b1)   # l1(e0) + l1(e1)
    h = jnp.maximum(h, 0.0)
    h = h @ w2.T + b2
    h = jnp.maximum(h, 0.0)
    ref = h @ unembed_w.T

    assert logits.shape == (batch, n_vocab)
    max_err = float(jnp.max(jnp.abs(logits - ref)))
    assert jnp.allclose(logits, ref, atol=1e-4, rtol=1e-4), max_err
    print("KERNEL_OK")
</pallas_src>

<mosaic_0001>
module attributes {stable_mosaic.version = 11 : i64} {
  func.func @_fused_forward_kernel(%arg0: i32, %arg1: i32, %arg2: memref<8xi32, #tpu.memory_space<smem>>, %arg3: memref<8xi32, #tpu.memory_space<smem>>, %arg4: memref<256x128xf32, #tpu.memory_space<any>>, %arg5: memref<128x128xf32, #tpu.memory_space<vmem>>, %arg6: memref<1x128xf32, #tpu.memory_space<vmem>>, %arg7: memref<128x128xf32, #tpu.memory_space<vmem>>, %arg8: memref<1x128xf32, #tpu.memory_space<vmem>>, %arg9: memref<128x256xf32, #tpu.memory_space<vmem>>, %arg10: memref<8x256xf32, #tpu.memory_space<vmem>>, %arg11: memref<8x128xf32, #tpu.memory_space<vmem>>, %arg12: memref<8x128xf32, #tpu.memory_space<vmem>>, %arg13: memref<8x128xf32, #tpu.memory_space<vmem>>, %arg14: memref<!tpu.dma_semaphore, #tpu.memory_space<semaphore_mem>>) attributes {dimension_semantics = [#tpu.dimension_semantics<parallel>, #tpu.dimension_semantics<arbitrary>], iteration_bounds = array<i64: 1, 1>, scalar_prefetch = 2 : i64, scratch_operands = 4 : i64, tpu.core_type = #tpu.core_type<tc>, window_params = [{}, {pipeline_mode = #tpu.pipeline_mode<synchronous>, transform_indices = @transform_1, window_bounds = array<i64: 128, 128>}, {pipeline_mode = #tpu.pipeline_mode<synchronous>, transform_indices = @transform_2, window_bounds = array<i64: 1, 128>}, {pipeline_mode = #tpu.pipeline_mode<synchronous>, transform_indices = @transform_3, window_bounds = array<i64: 128, 128>}, {pipeline_mode = #tpu.pipeline_mode<synchronous>, transform_indices = @transform_4, window_bounds = array<i64: 1, 128>}, {transform_indices = @transform_5, window_bounds = array<i64: 128, 256>}, {transform_indices = @transform_6, window_bounds = array<i64: 8, 256>}]} {
    %c0_i32 = arith.constant 0 : i32
    %0 = arith.cmpi eq, %arg1, %c0_i32 : i32
    %1 = arith.extui %0 : i1 to i32
    %c0_i32_0 = arith.constant 0 : i32
    %2 = arith.cmpi ne, %1, %c0_i32_0 : i32
    scf.if %2 {
      %c8_i32 = arith.constant 8 : i32
      %7 = arith.muli %arg0, %c8_i32 : i32
      %c0_i32_6 = arith.constant 0 : i32
      %c8_i32_7 = arith.constant 8 : i32
      %8 = arith.addi %c0_i32_6, %c8_i32_7 : i32
      %c1_i32 = arith.constant 1 : i32
      scf.for %arg15 = %c0_i32_6 to %8 step %c1_i32  : i32 {
        %c1_i32_30 = arith.constant 1 : i32
        %30 = arith.muli %arg15, %c1_i32_30 : i32
        %c0_i32_31 = arith.constant 0 : i32
        %31 = arith.addi %c0_i32_31, %30 : i32
        %32 = arith.addi %7, %31 : i32
        %33 = arith.index_cast %32 : i32 to index
        %34 = memref.load %arg2[%33] : memref<8xi32, #tpu.memory_space<smem>>
        %35 = arith.addi %7, %31 : i32
        %36 = arith.index_cast %35 : i32 to index
        %37 = memref.load %arg3[%36] : memref<8xi32, #tpu.memory_space<smem>>
        %c0_i32_32 = arith.constant 0 : i32
        %38 = tpu.memref_slice %arg4[%34, %c0_i32_32] : memref<256x128xf32, #tpu.memory_space<any>> -> memref<1x128xf32, #tpu.memory_space<any>>
        %c0_i32_33 = arith.constant 0 : i32
        %39 = tpu.memref_slice %arg11[%31, %c0_i32_33] : memref<8x128xf32, #tpu.memory_space<vmem>> -> memref<1x128xf32, #tpu.memory_space<vmem>>
        tpu.enqueue_dma source(%38 : memref<1x128xf32, #tpu.memory_space<any>>) target(%39 : memref<1x128xf32, #tpu.memory_space<vmem>>) target_semaphore(%arg14 : memref<!tpu.dma_semaphore, #tpu.memory_space<semaphore_mem>>)
        %c0_i32_34 = arith.constant 0 : i32
        %40 = tpu.memref_slice %arg4[%37, %c0_i32_34] : memref<256x128xf32, #tpu.memory_space<any>> -> memref<1x128xf32, #tpu.memory_space<any>>
        %c0_i32_35 = arith.constant 0 : i32
        %41 = tpu.memref_slice %arg12[%31, %c0_i32_35] : memref<8x128xf32, #tpu.memory_space<vmem>> -> memref<1x128xf32, #tpu.memory_space<vmem>>
        tpu.enqueue_dma source(%40 : memref<1x128xf32, #tpu.memory_space<any>>) target(%41 : memref<1x128xf32, #tpu.memory_space<vmem>>) target_semaphore(%arg14 : memref<!tpu.dma_semaphore, #tpu.memory_space<semaphore_mem>>)
      }
      %c8_i32_8 = arith.constant 8 : i32
      %c0_i32_9 = arith.constant 0 : i32
      %c16_i32 = arith.constant 16 : i32
      %9 = arith.addi %c0_i32_9, %c16_i32 : i32
      %c1_i32_10 = arith.constant 1 : i32
      scf.for %arg15 = %c0_i32_9 to %9 step %c1_i32_10  : i32 {
        %c0_i32_30 = arith.constant 0 : i32
        %c0_i32_31 = arith.constant 0 : i32
        %30 = tpu.memref_slice %arg4[%c0_i32_30, %c0_i32_31] : memref<256x128xf32, #tpu.memory_space<any>> -> memref<1x128xf32, #tpu.memory_space<any>>
        %c0_i32_32 = arith.constant 0 : i32
        %c0_i32_33 = arith.constant 0 : i32
        %31 = tpu.memref_slice %arg11[%c0_i32_32, %c0_i32_33] : memref<8x128xf32, #tpu.memory_space<vmem>> -> memref<1x128xf32, #tpu.memory_space<vmem>>
        tpu.wait_dma2 semaphore(%arg14 : memref<!tpu.dma_semaphore, #tpu.memory_space<semaphore_mem>>) src(%30 : memref<1x128xf32, #tpu.memory_space<any>>) dst(%31 : memref<1x128xf32, #tpu.memory_space<vmem>>)
      }
      %c0_11 = arith.constant 0 : index
      %c0_12 = arith.constant 0 : index
      %10 = vector.load %arg11[%c0_11, %c0_12] : memref<8x128xf32, #tpu.memory_space<vmem>>, vector<8x128xf32>
      %c0_13 = arith.constant 0 : index
      %c0_14 = arith.constant 0 : index
      %11 = vector.load %arg12[%c0_13, %c0_14] : memref<8x128xf32, #tpu.memory_space<vmem>>, vector<8x128xf32>
      %12 = arith.addf %10, %11 : vector<8x128xf32>
      %c0_15 = arith.constant 0 : index
      %c0_16 = arith.constant 0 : index
      %13 = vector.load %arg5[%c0_15, %c0_16] : memref<128x128xf32, #tpu.memory_space<vmem>>, vector<128x128xf32>
      %cst_17 = arith.constant dense<0.000000e+00> : vector<8x128xf32>
      %14 = tpu.matmul %12, %13, %cst_17 {dimension_numbers = #tpu.dot_dimension_numbers<[1], [0], [0], [1], [0, 0, 1, 1], [], []>} : vector<8x128xf32>, vector<128x128xf32>, vector<8x128xf32> -> vector<8x128xf32>
      %c0_18 = arith.constant 0 : index
      %c0_19 = arith.constant 0 : index
      %15 = vector.load %arg6[%c0_18, %c0_19] : memref<1x128xf32, #tpu.memory_space<vmem>>, vector<1x128xf32>
      %cst_20 = arith.constant 2.000000e+00 : f32
      %16 = vector.broadcast %cst_20 : f32 to vector<1x128xf32>
      %17 = arith.mulf %16, %15 : vector<1x128xf32>
      %18 = vector.broadcast %17 : vector<1x128xf32> to vector<8x128xf32>
      %19 = arith.addf %14, %18 : vector<8x128xf32>
      %cst_21 = arith.constant 0.000000e+00 : f32
      %20 = vector.broadcast %cst_21 : f32 to vector<8x128xf32>
      %21 = arith.maximumf %19, %20 : vector<8x128xf32>
      %c0_22 = arith.constant 0 : index
      %c0_23 = arith.constant 0 : index
      %22 = vector.load %arg7[%c0_22, %c0_23] : memref<128x128xf32, #tpu.memory_space<vmem>>, vector<128x128xf32>
      %cst_24 = arith.constant dense<0.000000e+00> : vector<8x128xf32>
      %23 = tpu.matmul %21, %22, %cst_24 {dimension_numbers = #tpu.dot_dimension_numbers<[1], [0], [0], [1], [0, 0, 1, 1], [], []>} : vector<8x128xf32>, vector<128x128xf32>, vector<8x128xf32> -> vector<8x128xf32>
      %c0_25 = arith.constant 0 : index
      %c0_26 = arith.constant 0 : index
      %24 = vector.load %arg8[%c0_25, %c0_26] : memref<1x128xf32, #tpu.memory_space<vmem>>, vector<1x128xf32>
      %25 = vector.broadcast %24 : vector<1x128xf32> to vector<8x128xf32>
      %26 = arith.addf %23, %25 : vector<8x128xf32>
      %cst_27 = arith.constant 0.000000e+00 : f32
      %27 = vector.broadcast %cst_27 : f32 to vector<8x128xf32>
      %28 = arith.maximumf %26, %27 : vector<8x128xf32>
      %c0_28 = arith.constant 0 : index
      %c0_29 = arith.constant 0 : index
      %29 = vector.load %arg13[%c0_28, %c0_29] : memref<8x128xf32, #tpu.memory_space<vmem>>, vector<8x128xf32>
      tpu.vector_store %arg13[%c0_28, %c0_29], %28 {strides = array<i32>} : memref<8x128xf32, #tpu.memory_space<vmem>>, vector<8x128xf32>,
    } else {
    }
    %c0 = arith.constant 0 : index
    %c0_1 = arith.constant 0 : index
    %3 = vector.load %arg13[%c0, %c0_1] : memref<8x128xf32, #tpu.memory_space<vmem>>, vector<8x128xf32>
    %c0_2 = arith.constant 0 : index
    %c0_3 = arith.constant 0 : index
    %4 = vector.load %arg9[%c0_2, %c0_3] : memref<128x256xf32, #tpu.memory_space<vmem>>, vector<128x256xf32>
    %cst = arith.constant dense<0.000000e+00> : vector<8x256xf32>
    %5 = tpu.matmul %3, %4, %cst {dimension_numbers = #tpu.dot_dimension_numbers<[1], [0], [0], [1], [0, 0, 1, 1], [], []>} : vector<8x128xf32>, vector<128x256xf32>, vector<8x256xf32> -> vector<8x256xf32>
    %c0_4 = arith.constant 0 : index
    %c0_5 = arith.constant 0 : index
    %6 = vector.load %arg10[%c0_4, %c0_5] : memref<8x256xf32, #tpu.memory_space<vmem>>, vector<8x256xf32>
    tpu.vector_store %arg10[%c0_4, %c0_5], %5 {strides = array<i32>} : memref<8x256xf32, #tpu.memory_space<vmem>>, vector<8x256xf32>,
    return
  }
  func.func @transform_1(%arg0: i32, %arg1: i32, %arg2: memref<8xi32, #tpu.memory_space<smem>>, %arg3: memref<8xi32, #tpu.memory_space<smem>>) -> (i32, i32) {
    %c0_i32 = arith.constant 0 : i32
    %c0_i32_0 = arith.constant 0 : i32
    %c0_i32_1 = arith.constant 0 : i32
    return %c0_i32, %c0_i32_0 : i32, i32
  }
  func.func @transform_2(%arg0: i32, %arg1: i32, %arg2: memref<8xi32, #tpu.memory_space<smem>>, %arg3: memref<8xi32, #tpu.memory_space<smem>>) -> (i32, i32) {
    %c0_i32 = arith.constant 0 : i32
    %c0_i32_0 = arith.constant 0 : i32
    %c0_i32_1 = arith.constant 0 : i32
    return %c0_i32, %c0_i32_0 : i32, i32
  }
  func.func @transform_3(%arg0: i32, %arg1: i32, %arg2: memref<8xi32, #tpu.memory_space<smem>>, %arg3: memref<8xi32, #tpu.memory_space<smem>>) -> (i32, i32) {
    %c0_i32 = arith.constant 0 : i32
    %c0_i32_0 = arith.constant 0 : i32
    %c0_i32_1 = arith.constant 0 : i32
    return %c0_i32, %c0_i32_0 : i32, i32
  }
  func.func @transform_4(%arg0: i32, %arg1: i32, %arg2: memref<8xi32, #tpu.memory_space<smem>>, %arg3: memref<8xi32, #tpu.memory_space<smem>>) -> (i32, i32) {
    %c0_i32 = arith.constant 0 : i32
    %c0_i32_0 = arith.constant 0 : i32
    %c0_i32_1 = arith.constant 0 : i32
    return %c0_i32, %c0_i32_0 : i32, i32
  }
  func.func @transform_5(%arg0: i32, %arg1: i32, %arg2: memref<8xi32, #tpu.memory_space<smem>>, %arg3: memref<8xi32, #tpu.memory_space<smem>>) -> (i32, i32) {
    %c0_i32 = arith.constant 0 : i32
    %c0_i32_0 = arith.constant 0 : i32
    return %c0_i32, %arg1 : i32, i32
  }
  func.func @transform_6(%arg0: i32, %arg1: i32, %arg2: memref<8xi32, #tpu.memory_space<smem>>, %arg3: memref<8xi32, #tpu.memory_space<smem>>) -> (i32, i32) {
    %c0_i32 = arith.constant 0 : i32
    return %arg0, %arg1 : i32, i32
  }
}

</mosaic_0001>

<llo_original>
// kernel: tpu_custom_call.1
$region0: #{tpu_custom_call.1}
  #allocation0 [shape = 'u32[]', space=smem, size = 0x4, offset = 0x4, fixed_abs, tag = 'smem constant byte address 0x4 - core index']
  #allocation1 [shape = 'u32[144,128]{1,0:T(1,128)}', space=vmem, size = 0x12000, scoped, tag = 'internal scratch']
  #allocation2 [shape = 'f32[8,128]{1,0:T(8,128)}', space=vmem, size = 0x1000, scoped, tag = 'scratch operand']
  #allocation3 [shape = 'f32[8,128]{1,0:T(8,128)}', space=vmem, size = 0x1000, scoped, tag = 'scratch operand']
  #allocation4 [shape = 'f32[8,128]{1,0:T(8,128)}', space=vmem, size = 0x1000, scoped, tag = 'scratch operand']
  #allocation5 [shape = 's32[1]{0}', space=sflag, size = 0x4, scoped, tag = 'scratch operand']
  #allocation6 [shape = 's32[1]{0}', space=sflag, size = 0x4, scoped, tag = 'scoped memory for tpu_custom_call.1']
  #allocation7 [shape = 'u8[512]{0}', space=smem, size = 0x200, scoped, tag = 'prefetched SMEM operand 0']
  #allocation8 [shape = 'u8[512]{0}', space=smem, size = 0x200, scoped, tag = 'prefetched SMEM operand 1']
  #allocation16 [shape = 's32[]', space=sflag, size = 0x4, offset = 0, fixed_abs, tag = 'sflag constant byte address 0x0 - dummy sync flag']
  #allocation17 [shape = 's32[]', space=sflag, size = 0x4, offset = 0, fixed_abs, tag = 'sflag constant byte address 0x0 - dummy sync flag']
  #allocation18 [shape = 'u32[]', space=smem, size = 0x4, offset = 0x44, fixed_abs, tag = 'smem constant byte address 0x44 - assertion arg 0']
  #allocation19 [shape = 'u32[]', space=smem, size = 0x4, offset = 0x48, fixed_abs, tag = 'smem constant byte address 0x48 - assertion arg 1']
  #allocation20 [shape = 's32[]', space=sflag, size = 0x4, offset = 0, fixed_abs, tag = 'sflag constant byte address 0x0 - dummy sync flag']
  #allocation21 [shape = 's32[]', space=sflag, size = 0x4, offset = 0, fixed_abs, tag = 'sflag constant byte address 0x0 - dummy sync flag']
  %s0 = inlined_call_operand.hbm [shape: s32[8], index: 0, kind: input, shape index: {}]
  %s1 = inlined_call_operand.vmem [shape: s32[8], index: 1, kind: input, shape index: {}]
  %s2 = inlined_call_operand.hbm [shape: f32[256,128], index: 2, kind: input, shape index: {}]
  %s3 = inlined_call_operand.hbm [shape: f32[128,128], index: 3, kind: input, shape index: {}]
  %s4 = inlined_call_operand.vmem [shape: f32[1,128], index: 4, kind: input, shape index: {}]
  %s5 = inlined_call_operand.hbm [shape: f32[128,128], index: 5, kind: input, shape index: {}]
  %s6 = inlined_call_operand.vmem [shape: f32[1,128], index: 6, kind: input, shape index: {}]
  %s7 = inlined_call_operand.hbm [shape: f32[128,256], index: 7, kind: input, shape index: {}]
  %s8 = inlined_call_operand.hbm [shape: f32[8,256], index: 8, kind: output, shape index: {}]
  %s9 = sld [smem:[#allocation0]]
  $region68: #{tpu_custom_call.1} parent=0
    _
  %s11 = ssub.s32 1, %s9
  %s12 = scalar_select 0, %s11, %s9
  %14 = dma.hbm_to_smem %s0, 16, [#allocation7], [#allocation6]
  %s15 = sshll.u32 %s1, 4
  %s16 = int_to_ptr.vmem [resolvable:$true] %s15
  %18 = dma.vmem_to_smem %s16, 16, [#allocation8], [#allocation6]
  %19 = dma.done [#allocation6], 32
  %20 = sfence
  $region1: #{tpu_custom_call.1} parent=0
    #allocation9 [shape = 'u8[65536]{0}', space=vmem, size = 0x10000, scoped, tag = 'input window, operand 3, single buffered']
    #allocation10 [shape = 's32[1]{0}', space=sflag, size = 0x4, scoped, tag = 'scoped memory for tpu_custom_call.1']
    #allocation11 [shape = 's32[1]{0}', space=sflag, size = 0x4, scoped, tag = 'scoped memory for tpu_custom_call.1']
    #allocation12 [shape = 'u8[65536]{0}', space=vmem, size = 0x10000, scoped, tag = 'input window, operand 5, single buffered']
    #allocation13 [shape = 's32[1]{0}', space=sflag, size = 0x4, scoped, tag = 'scoped memory for tpu_custom_call.1']
    #allocation14 [shape = 'u8[131072]{0}', space=vmem, size = 0x20000, scoped, tag = 'input window, operand 7, single buffered']
    #allocation15 [shape = 'u8[8192]{0}', space=vmem, size = 0x2000, scoped, tag = 'output window, operand 0, single buffered']
    %21 = vsyncpa [#allocation10], 0
    %22 = vsyncpa [#allocation13], 0
    %23 = vsyncpa [#allocation11], 0
    // Predicated region
    $region2: #{tpu_custom_call.1} parent=1 // pred_check
      _
    $region3: #{tpu_custom_call.1} parent=1 // pred_check_branch
      %25 = sbr.rel (0) target = $region5
    $region4: #{tpu_custom_call.1} parent=1 // pred_region
      %s27 = ssub.s32 2048, 2048
      %28 = vsyncadd [#allocation10], %s27
      %s29 = sshll.u32 [#allocation9], 4
      %s30 = int_to_ptr.vmem [resolvable:$true] %s29
      %35 = dma.hbm_to_vmem [thread:$0]  %s3, 2048, %s30, [#allocation10], 128, 128, 8
    $region5: #{tpu_custom_call.1} parent=1 // pred_fallthru
      _
    // Predicated region
    $region6: #{tpu_custom_call.1} parent=1 // pred_check
      _
    $region7: #{tpu_custom_call.1} parent=1 // pred_check_branch
      %37 = sbr.rel (0) target = $region9
    $region8: #{tpu_custom_call.1} parent=1 // pred_region
      _
    $region9: #{tpu_custom_call.1} parent=1 // pred_fallthru
      _
    // Predicated region
    $region10: #{tpu_custom_call.1} parent=1 // pred_check
      _
    $region11: #{tpu_custom_call.1} parent=1 // pred_check_branch
      %39 = sbr.rel (0) target = $region13
    $region12: #{tpu_custom_call.1} parent=1 // pred_region
      %s41 = ssub.s32 2048, 2048
      %42 = vsyncadd [#allocation13], %s41
      %s43 = sshll.u32 [#allocation12], 4
      %s44 = int_to_ptr.vmem [resolvable:$true] %s43
      %49 = dma.hbm_to_vmem [thread:$0]  %s5, 2048, %s44, [#allocation13], 128, 128, 8
    $region13: #{tpu_custom_call.1} parent=1 // pred_fallthru
      _
    // Predicated region
    $region14: #{tpu_custom_call.1} parent=1 // pred_check
      _
    $region15: #{tpu_custom_call.1} parent=1 // pred_check_branch
      %51 = sbr.rel (0) target = $region17
    $region16: #{tpu_custom_call.1} parent=1 // pred_region
      _
    $region17: #{tpu_custom_call.1} parent=1 // pred_fallthru
      _
    // Predicated region
    $region18: #{tpu_custom_call.1} parent=1 // pred_check
      _
    $region19: #{tpu_custom_call.1} parent=1 // pred_check_branch
      %53 = sbr.rel (0) target = $region21
    $region20: #{tpu_custom_call.1} parent=1 // pred_region
      %s55 = ssub.s32 4096, 4096
      %56 = vsyncadd [#allocation13], %s55
      %s57 = sshll.u32 [#allocation14], 4
      %s58 = int_to_ptr.vmem [resolvable:$true] %s57
      %63 = dma.hbm_to_vmem [thread:$0]  %s7, 4096, %s58, [#allocation13], 256, 256, 16
    $region21: #{tpu_custom_call.1} parent=1 // pred_fallthru
      _
    // Predicated region
    $region22: #{tpu_custom_call.1} parent=1 // pred_check
      _
    $region23: #{tpu_custom_call.1} parent=1 // pred_check_branch
      %65 = sbr.rel (0) target = $region25
    $region24: #{tpu_custom_call.1} parent=1 // pred_region
      %66 = dma.done [#allocation10], 2048
    $region25: #{tpu_custom_call.1} parent=1 // pred_fallthru
      _
    // Predicated region
    $region26: #{tpu_custom_call.1} parent=1 // pred_check
      _
    $region27: #{tpu_custom_call.1} parent=1 // pred_check_branch
      %68 = sbr.rel (0) target = $region29
    $region28: #{tpu_custom_call.1} parent=1 // pred_region
      %69 = dma.done [#allocation13], 2048
    $region29: #{tpu_custom_call.1} parent=1 // pred_fallthru
      _
    // Predicated region
    $region30: #{tpu_custom_call.1} parent=1 // pred_check
      _
    $region31: #{tpu_custom_call.1} parent=1 // pred_check_branch
      %71 = sbr.rel (0) target = $region33
    $region32: #{tpu_custom_call.1} parent=1 // pred_region
      %72 = dma.done [#allocation13], 4096
    $region33: #{tpu_custom_call.1} parent=1 // pred_fallthru
      _
    %p73 = scmp.eq.s32.totalorder 0, 0
    // Predicated region
    $region34: #{tpu_custom_call.1} parent=1 // pred_check
      %p74 = pneg %p73
    $region35: #{tpu_custom_call.1} parent=1 // pred_check_branch
      %76 = sbr.rel (%p74) target = $region37
    $region36: #{tpu_custom_call.1} parent=1 // pred_region
      %s77 = smul.u32 0, 8
      loop: start=0, step=1, limit=8
      $region38: #{tpu_custom_call.1} parent=36 // loop_pre_header
        _
      $region39: #{tpu_custom_call.1} parent=36 // loop_header
        %s79 = sphi 0, %s83
        %p80 = scmp.ge.s32.totalorder %s79, 8
      $region40: #{tpu_custom_call.1} parent=36 // loop_header_branch
        %82 = sbr.rel (%p80) target = $region44
      $region41: #{tpu_custom_call.1} parent=36 // loop_body
        %s84 = sadd.s32 %s77, %s79
        %s85 = sld [smem:[#allocation7 + %s84]]
        %s86 = sld [smem:[#allocation8 + %s84]]
        %s87 = smul.addr %s85, 16
        %s88 = scalar_lea.hbm %s2, %s87
        %s89 = scalar_lea.vmem [#allocation2], %s79
        // Predicated region
        $region45: #{tpu_custom_call.1} parent=41 // pred_check
          _
        $region46: #{tpu_custom_call.1} parent=41 // pred_check_branch
          %91 = sbr.rel target = $region48
        $region47: #{tpu_custom_call.1} parent=41 // pred_region
          %92 = sst [smem:[#allocation18]] [#allocation17]
          %93 = sst [smem:[#allocation19]] [#allocation16]
        $region48: #{tpu_custom_call.1} parent=41 // pred_fallthru
          _
        %95 = shalt.err (0)
        %s97 = sshll.u32 %s89, 4
        %s98 = int_to_ptr.vmem [resolvable:$true] %s97
        %100 = dma.hbm_to_vmem [thread:$0]  %s88, 16, %s98, [#allocation5]
        %s101 = smul.addr %s86, 16
        %s102 = scalar_lea.hbm %s2, %s101
        %s103 = scalar_lea.vmem [#allocation3], %s79
        // Predicated region
        $region49: #{tpu_custom_call.1} parent=41 // pred_check
          _
        $region50: #{tpu_custom_call.1} parent=41 // pred_check_branch
          %105 = sbr.rel target = $region52
        $region51: #{tpu_custom_call.1} parent=41 // pred_region
          %106 = sst [smem:[#allocation18]] [#allocation21]
          %107 = sst [smem:[#allocation19]] [#allocation20]
        $region52: #{tpu_custom_call.1} parent=41 // pred_fallthru
          _
        %109 = shalt.err (0)
        %s111 = sshll.u32 %s103, 4
        %s112 = int_to_ptr.vmem [resolvable:$true] %s111
        %114 = dma.hbm_to_vmem [thread:$0]  %s102, 16, %s112, [#allocation5]
      $region42: #{tpu_custom_call.1} parent=36 // loop_footer
        %s83 = sadd.s32 1, %s79
      $region43: #{tpu_custom_call.1} parent=36 // loop_footer_branch
        %78 = sbr.rel target = $region39
      $region44: #{tpu_custom_call.1} parent=36 // loop_exit
        _
      loop: start=0, step=1, limit=16
      $region53: #{tpu_custom_call.1} parent=36 // loop_pre_header
        _
      $region54: #{tpu_custom_call.1} parent=36 // loop_header
        %s116 = sphi 0, %s120
        %p117 = scmp.ge.s32.totalorder %s116, 16
      $region55: #{tpu_custom_call.1} parent=36 // loop_header_branch
        %119 = sbr.rel (%p117) target = $region59
      $region56: #{tpu_custom_call.1} parent=36 // loop_body
        %s121 = smul.u32 1, 1
        %s122 = sshll.u32 %s121, 4
        %123 = dma.done [#allocation5], %s122
      $region57: #{tpu_custom_call.1} parent=36 // loop_footer
        %s120 = sadd.s32 1, %s116
      $region58: #{tpu_custom_call.1} parent=36 // loop_footer_branch
        %115 = sbr.rel target = $region54
      $region59: #{tpu_custom_call.1} parent=36 // loop_exit
        _
      %v124 = vld [vmem:[#allocation2] sm:$0xff]
      %v125 = vld [vmem:[#allocation3] sm:$0xff]
      %v126 = vadd.f32 %v124, %v125
      %v127 = vld [vmem:[#allocation9] sm:$0xff]
      %v128 = vld [vmem:[#allocation9 + $0x8] sm:$0xff]
      %v129 = vld [vmem:[#allocation9 + $0x10] sm:$0xff]
      %v130 = vld [vmem:[#allocation9 + $0x18] sm:$0xff]
      %v131 = vld [vmem:[#allocation9 + $0x20] sm:$0xff]
      %v132 = vld [vmem:[#allocation9 + $0x28] sm:$0xff]
      %v133 = vld [vmem:[#allocation9 + $0x30] sm:$0xff]
      %v134 = vld [vmem:[#allocation9 + $0x38] sm:$0xff]
      %v135 = vld [vmem:[#allocation9 + $0x40] sm:$0xff]
      %v136 = vld [vmem:[#allocation9 + $0x48] sm:$0xff]
      %v137 = vld [vmem:[#allocation9 + $0x50] sm:$0xff]
      %v138 = vld [vmem:[#allocation9 + $0x58] sm:$0xff]
      %v139 = vld [vmem:[#allocation9 + $0x60] sm:$0xff]
      %v140 = vld [vmem:[#allocation9 + $0x68] sm:$0xff]
      %v141 = vld [vmem:[#allocation9 + $0x70] sm:$0xff]
      %v142 = vld [vmem:[#allocation9 + $0x78] sm:$0xff]
      %v143 = vld [vmem:[%s4] sm:$0x1]
      %v144 = vmul.f32 %v143, 2.0
      %v146 = vlaneseq
      %v147 = vshrl.u32 %v146, 7
      %v148 = vsub.s32 0, %v147
      %v149 = vrot.slane %v144, %v148
      %151 = vmatprep.subr.mxu0 0.0
      %152 = vmatpush1.msra.mxu0 %v127
      %153 = vmatprep.subr.mxu0 0.0
      %154 = vmatpush1.msra.mxu0 %v128
      %155 = vmatprep.subr.mxu0 0.0
      %156 = vmatpush1.msra.mxu0 %v129
      %157 = vmatprep.subr.mxu0 0.0
      %158 = vmatpush1.msra.mxu0 %v130
      %159 = vmatprep.subr.mxu0 0.0
      %160 = vmatpush1.msra.mxu0 %v131
      %161 = vmatprep.subr.mxu0 0.0
      %162 = vmatpush1.msra.mxu0 %v132
      %163 = vmatprep.subr.mxu0 0.0
      %164 = vmatpush1.msra.mxu0 %v133
      %165 = vmatprep.subr.mxu0 0.0
      %166 = vmatpush1.msra.mxu0 %v134
      %167 = vmatprep.subr.mxu0 0.0
      %168 = vmatpush1.msra.mxu0 %v135
      %169 = vmatprep.subr.mxu0 0.0
      %170 = vmatpush1.msra.mxu0 %v136
      %171 = vmatprep.subr.mxu0 0.0
      %172 = vmatpush1.msra.mxu0 %v137
      %173 = vmatprep.subr.mxu0 0.0
      %174 = vmatpush1.msra.mxu0 %v138
      %175 = vmatprep.subr.mxu0 0.0
      %176 = vmatpush1.msra.mxu0 %v139
      %177 = vmatprep.subr.mxu0 0.0
      %178 = vmatpush1.msra.mxu0 %v140
      %179 = vmatprep.subr.mxu0 0.0
      %180 = vmatpush1.msra.mxu0 %v141
      %181 = vmatprep.subr.mxu0 0.0
      %182 = vmatpush1.msra.mxu0 %v142
      %183 = vmatprep.subr.mxu0 0.0
      %184 = vmatpush1.msra.mxu0 0.0
      %185 = vmatprep.subr.mxu0 0.0
      %186 = vmatpush1.msra.mxu0 0.0
      %187 = vmatprep.subr.mxu0 0.0
      %188 = vmatpush1.msra.mxu0 0.0
      %189 = vmatprep.subr.mxu0 0.0
      %190 = vmatpush1.msra.mxu0 0.0
      %191 = vmatprep.subr.mxu0 0.0
      %192 = vmatpush1.msra.mxu0 0.0
      %193 = vmatprep.subr.mxu0 0.0
      %194 = vmatpush1.msra.mxu0 0.0
      %195 = vmatprep.subr.mxu0 0.0
      %196 = vmatpush1.msra.mxu0 0.0
      %197 = vmatprep.subr.mxu0 0.0
      %198 = vmatpush1.msra.mxu0 0.0
      %199 = vmatprep.subr.mxu0 0.0
      %200 = vmatpush1.msra.mxu0 0.0
      %201 = vmatprep.subr.mxu0 0.0
      %202 = vmatpush1.msra.mxu0 0.0
      %203 = vmatprep.subr.mxu0 0.0
      %204 = vmatpush1.msra.mxu0 0.0
      %205 = vmatprep.subr.mxu0 0.0
      %206 = vmatpush1.msra.mxu0 0.0
      %207 = vmatprep.subr.mxu0 0.0
      %208 = vmatpush1.msra.mxu0 0.0
      %209 = vmatprep.subr.mxu0 0.0
      %210 = vmatpush1.msra.mxu0 0.0
      %211 = vmatprep.subr.mxu0 0.0
      %212 = vmatpush1.msra.mxu0 0.0
      %213 = vmatprep.subr.mxu0 0.0
      %214 = vmatpush1.msra.mxu0 0.0
      %215 = vmatprep.mubr.f32.mxu0 0.0
      %216 = vmatmul.mubr.f32.gmra.mrb[0].mxu0 %v126
      %v217 = vpop.f32.mrb[0].mxu0
      %v218 = vadd.f32 %v149, %v217
      %v219 = vpop.f32.mrb[0].mxu0
      %220 = vdwg.mxu0
      %v221 = vmax.f32 %v218, 0.0
      %v222 = vld [vmem:[#allocation12] sm:$0xff]
      %v223 = vld [vmem:[#allocation12 + $0x8] sm:$0xff]
      %v224 = vld [vmem:[#allocation12 + $0x10] sm:$0xff]
      %v225 = vld [vmem:[#allocation12 + $0x18] sm:$0xff]
      %v226 = vld [vmem:[#allocation12 + $0x20] sm:$0xff]
      %v227 = vld [vmem:[#allocation12 + $0x28] sm:$0xff]
      %v228 = vld [vmem:[#allocation12 + $0x30] sm:$0xff]
      %v229 = vld [vmem:[#allocation12 + $0x38] sm:$0xff]
      %v230 = vld [vmem:[#allocation12 + $0x40] sm:$0xff]
      %v231 = vld [vmem:[#allocation12 + $0x48] sm:$0xff]
      %v232 = vld [vmem:[#allocation12 + $0x50] sm:$0xff]
      %v233 = vld [vmem:[#allocation12 + $0x58] sm:$0xff]
      %v234 = vld [vmem:[#allocation12 + $0x60] sm:$0xff]
      %v235 = vld [vmem:[#allocation12 + $0x68] sm:$0xff]
      %v236 = vld [vmem:[#allocation12 + $0x70] sm:$0xff]
      %v237 = vld [vmem:[#allocation12 + $0x78] sm:$0xff]
      %v238 = vld [vmem:[%s6] sm:$0x1]
      %v240 = vlaneseq
      %v241 = vshrl.u32 %v240, 7
      %v242 = vsub.s32 0, %v241
      %v243 = vrot.slane %v238, %v242
      %245 = vmatprep.subr.mxu0 0.0
      %246 = vmatpush1.msra.mxu0 %v222
      %247 = vmatprep.subr.mxu0 0.0
      %248 = vmatpush1.msra.mxu0 %v223
      %249 = vmatprep.subr.mxu0 0.0
      %250 = vmatpush1.msra.mxu0 %v224
      %251 = vmatprep.subr.mxu0 0.0
      %252 = vmatpush1.msra.mxu0 %v225
      %253 = vmatprep.subr.mxu0 0.0
      %254 = vmatpush1.msra.mxu0 %v226
      %255 = vmatprep.subr.mxu0 0.0
      %256 = vmatpush1.msra.mxu0 %v227
      %257 = vmatprep.subr.mxu0 0.0
      %258 = vmatpush1.msra.mxu0 %v228
      %259 = vmatprep.subr.mxu0 0.0
      %260 = vmatpush1.msra.mxu0 %v229
      %261 = vmatprep.subr.mxu0 0.0
      %262 = vmatpush1.msra.mxu0 %v230
      %263 = vmatprep.subr.mxu0 0.0
      %264 = vmatpush1.msra.mxu0 %v231
      %265 = vmatprep.subr.mxu0 0.0
      %266 = vmatpush1.msra.mxu0 %v232
      %267 = vmatprep.subr.mxu0 0.0
      %268 = vmatpush1.msra.mxu0 %v233
      %269 = vmatprep.subr.mxu0 0.0
      %270 = vmatpush1.msra.mxu0 %v234
      %271 = vmatprep.subr.mxu0 0.0
      %272 = vmatpush1.msra.mxu0 %v235
      %273 = vmatprep.subr.mxu0 0.0
      %274 = vmatpush1.msra.mxu0 %v236
      %275 = vmatprep.subr.mxu0 0.0
      %276 = vmatpush1.msra.mxu0 %v237
      %277 = vmatprep.subr.mxu0 0.0
      %278 = vmatpush1.msra.mxu0 0.0
      %279 = vmatprep.subr.mxu0 0.0
      %280 = vmatpush1.msra.mxu0 0.0
      %281 = vmatprep.subr.mxu0 0.0
      %282 = vmatpush1.msra.mxu0 0.0
      %283 = vmatprep.subr.mxu0 0.0
      %284 = vmatpush1.msra.mxu0 0.0
      %285 = vmatprep.subr.mxu0 0.0
      %286 = vmatpush1.msra.mxu0 0.0
      %287 = vmatprep.subr.mxu0 0.0
      %288 = vmatpush1.msra.mxu0 0.0
      %289 = vmatprep.subr.mxu0 0.0
      %290 = vmatpush1.msra.mxu0 0.0
      %291 = vmatprep.subr.mxu0 0.0
      %292 = vmatpush1.msra.mxu0 0.0
      %293 = vmatprep.subr.mxu0 0.0
      %294 = vmatpush1.msra.mxu0 0.0
      %295 = vmatprep.subr.mxu0 0.0
      %296 = vmatpush1.msra.mxu0 0.0
      %297 = vmatprep.subr.mxu0 0.0
      %298 = vmatpush1.msra.mxu0 0.0
      %299 = vmatprep.subr.mxu0 0.0
      %300 = vmatpush1.msra.mxu0 0.0
      %301 = vmatprep.subr.mxu0 0.0
      %302 = vmatpush1.msra.mxu0 0.0
      %303 = vmatprep.subr.mxu0 0.0
      %304 = vmatpush1.msra.mxu0 0.0
      %305 = vmatprep.subr.mxu0 0.0
      %306 = vmatpush1.msra.mxu0 0.0
      %307 = vmatprep.subr.mxu0 0.0
      %308 = vmatpush1.msra.mxu0 0.0
      %309 = vmatprep.mubr.f32.mxu0 0.0
      %310 = vmatmul.mubr.f32.gmra.mrb[0].mxu0 %v221
      %v311 = vpop.f32.mrb[0].mxu0
      %v312 = vadd.f32 %v243, %v311
      %v313 = vpop.f32.mrb[0].mxu0
      %314 = vdwg.mxu0
      %v315 = vmax.f32 %v312, 0.0
      %316 = vst [vmem:[#allocation4] sm:$0xff] %v315
    $region37: #{tpu_custom_call.1} parent=1 // pred_fallthru
      _
    %v317 = vld [vmem:[#allocation4] sm:$0xff]
    %v318 = vld [vmem:[#allocation14] sm:$0xff]
    %v319 = vld [vmem:[#allocation14 + $0x8] sm:$0xff]
    %v320 = vld [vmem:[#allocation14 + $0x10] sm:$0xff]
    %v321 = vld [vmem:[#allocation14 + $0x18] sm:$0xff]
    %v322 = vld [vmem:[#allocation14 + $0x20] sm:$0xff]
    %v323 = vld [vmem:[#allocation14 + $0x28] sm:$0xff]
    %v324 = vld [vmem:[#allocation14 + $0x30] sm:$0xff]
    %v325 = vld [vmem:[#allocation14 + $0x38] sm:$0xff]
    %v326 = vld [vmem:[#allocation14 + $0x40] sm:$0xff]
    %v327 = vld [vmem:[#allocation14 + $0x48] sm:$0xff]
    %v328 = vld [vmem:[#allocation14 + $0x50] sm:$0xff]
    %v329 = vld [vmem:[#allocation14 + $0x58] sm:$0xff]
    %v330 = vld [vmem:[#allocation14 + $0x60] sm:$0xff]
    %v331 = vld [vmem:[#allocation14 + $0x68] sm:$0xff]
    %v332 = vld [vmem:[#allocation14 + $0x70] sm:$0xff]
    %v333 = vld [vmem:[#allocation14 + $0x78] sm:$0xff]
    %v334 = vld [vmem:[#allocation14 + $0x80] sm:$0xff]
    %v335 = vld [vmem:[#allocation14 + $0x88] sm:$0xff]
    %v336 = vld [vmem:[#allocation14 + $0x90] sm:$0xff]
    %v337 = vld [vmem:[#allocation14 + $0x98] sm:$0xff]
    %v338 = vld [vmem:[#allocation14 + $0xa0] sm:$0xff]
    %v339 = vld [vmem:[#allocation14 + $0xa8] sm:$0xff]
    %v340 = vld [vmem:[#allocation14 + $0xb0] sm:$0xff]
    %v341 = vld [vmem:[#allocation14 + $0xb8] sm:$0xff]
    %v342 = vld [vmem:[#allocation14 + $0xc0] sm:$0xff]
    %v343 = vld [vmem:[#allocation14 + $0xc8] sm:$0xff]
    %v344 = vld [vmem:[#allocation14 + $0xd0] sm:$0xff]
    %v345 = vld [vmem:[#allocation14 + $0xd8] sm:$0xff]
    %v346 = vld [vmem:[#allocation14 + $0xe0] sm:$0xff]
    %v347 = vld [vmem:[#allocation14 + $0xe8] sm:$0xff]
    %v348 = vld [vmem:[#allocation14 + $0xf0] sm:$0xff]
    %v349 = vld [vmem:[#allocation14 + $0xf8] sm:$0xff]
    %350 = vmatprep.subr.mxu0 %v319
    %351 = vmatpush1.msra.mxu0 %v318
    %352 = vmatprep.subr.mxu0 %v321
    %353 = vmatpush1.msra.mxu0 %v320
    %354 = vmatprep.subr.mxu0 %v323
    %355 = vmatpush1.msra.mxu0 %v322
    %356 = vmatprep.subr.mxu0 %v325
    %357 = vmatpush1.msra.mxu0 %v324
    %358 = vmatprep.subr.mxu0 %v327
    %359 = vmatpush1.msra.mxu0 %v326
    %360 = vmatprep.subr.mxu0 %v329
    %361 = vmatpush1.msra.mxu0 %v328
    %362 = vmatprep.subr.mxu0 %v331
    %363 = vmatpush1.msra.mxu0 %v330
    %364 = vmatprep.subr.mxu0 %v333
    %365 = vmatpush1.msra.mxu0 %v332
    %366 = vmatprep.subr.mxu0 %v335
    %367 = vmatpush1.msra.mxu0 %v334
    %368 = vmatprep.subr.mxu0 %v337
    %369 = vmatpush1.msra.mxu0 %v336
    %370 = vmatprep.subr.mxu0 %v339
    %371 = vmatpush1.msra.mxu0 %v338
    %372 = vmatprep.subr.mxu0 %v341
    %373 = vmatpush1.msra.mxu0 %v340
    %374 = vmatprep.subr.mxu0 %v343
    %375 = vmatpush1.msra.mxu0 %v342
    %376 = vmatprep.subr.mxu0 %v345
    %377 = vmatpush1.msra.mxu0 %v344
    %378 = vmatprep.subr.mxu0 %v347
    %379 = vmatpush1.msra.mxu0 %v346
    %380 = vmatprep.subr.mxu0 %v349
    %381 = vmatpush1.msra.mxu0 %v348
    %382 = vmatprep.subr.mxu0 0.0
    %383 = vmatpush1.msra.mxu0 0.0
    %384 = vmatprep.subr.mxu0 0.0
    %385 = vmatpush1.msra.mxu0 0.0
    %386 = vmatprep.subr.mxu0 0.0
    %387 = vmatpush1.msra.mxu0 0.0
    %388 = vmatprep.subr.mxu0 0.0
    %389 = vmatpush1.msra.mxu0 0.0
    %390 = vmatprep.subr.mxu0 0.0
    %391 = vmatpush1.msra.mxu0 0.0
    %392 = vmatprep.subr.mxu0 0.0
    %393 = vmatpush1.msra.mxu0 0.0
    %394 = vmatprep.subr.mxu0 0.0
    %395 = vmatpush1.msra.mxu0 0.0
    %396 = vmatprep.subr.mxu0 0.0
    %397 = vmatpush1.msra.mxu0 0.0
    %398 = vmatprep.subr.mxu0 0.0
    %399 = vmatpush1.msra.mxu0 0.0
    %400 = vmatprep.subr.mxu0 0.0
    %401 = vmatpush1.msra.mxu0 0.0
    %402 = vmatprep.subr.mxu0 0.0
    %403 = vmatpush1.msra.mxu0 0.0
    %404 = vmatprep.subr.mxu0 0.0
    %405 = vmatpush1.msra.mxu0 0.0
    %406 = vmatprep.subr.mxu0 0.0
    %407 = vmatpush1.msra.mxu0 0.0
    %408 = vmatprep.subr.mxu0 0.0
    %409 = vmatpush1.msra.mxu0 0.0
    %410 = vmatprep.subr.mxu0 0.0
    %411 = vmatpush1.msra.mxu0 0.0
    %412 = vmatprep.subr.mxu0 0.0
    %413 = vmatpush1.msra.mxu0 0.0
    %414 = vmatprep.mubr.f32.mxu0 0.0
    %415 = vmatmul.mubr.f32.gmra.mrb[0].mxu0 %v317
    %v416 = vpop.f32.mrb[0].mxu0
    %v417 = vadd.f32 0.0, %v416
    %v418 = vpop.f32.mrb[0].mxu0
    %v419 = vadd.f32 0.0, %v418
    %420 = vdwg.mxu0
    %421 = vst [vmem:[#allocation15] sm:$0xff] %v417
    %422 = vst [vmem:[#allocation15 + $0x8] sm:$0xff] %v419
    // Predicated region
    $region60: #{tpu_custom_call.1} parent=1 // pred_check
      _
    $region61: #{tpu_custom_call.1} parent=1 // pred_check_branch
      %424 = sbr.rel (0) target = $region63
    $region62: #{tpu_custom_call.1} parent=1 // pred_region
      %s426 = ssub.s32 256, 256
      %427 = vsyncadd [#allocation11], %s426
      %s429 = sshll.u32 [#allocation15], 4
      %s430 = int_to_ptr.vmem [resolvable:$true] %s429
      %432 = dma.vmem_to_hbm [thread:$0]  %s430, 256, %s8, [#allocation11]
    $region63: #{tpu_custom_call.1} parent=1 // pred_fallthru
      _
    // Predicated region
    $region64: #{tpu_custom_call.1} parent=1 // pred_check
      _
    $region65: #{tpu_custom_call.1} parent=1 // pred_check_branch
      %434 = sbr.rel (0) target = $region67
    $region66: #{tpu_custom_call.1} parent=1 // pred_region
      %435 = dma.done [#allocation11], 256
    $region67: #{tpu_custom_call.1} parent=1 // pred_fallthru
      _
    %436 = vsyncpa [#allocation10], 1
    %437 = vsyncpa [#allocation13], 1
    %438 = vsyncpa [#allocation11], 1
  %439 = vsyncmov [#allocation5]
  %s440 = vpop.sfrf %439
  %p441 = scmp.eq.s32.totalorder %s440, 0
  %p442 = pneg %p441
  %444 = shalt.err (%p442)

</llo_original>
